<compile_context>
chip_gen: v6e
topology: v6e:2x2x1
jax: 0.10.0
libtpu: 0.0.40
codegen_flags: <defaults>
</compile_context>

<pallas_src>
import math

import jax
import jax.numpy as jnp
from jax import lax
from jax.experimental import pallas as pl
from jax.experimental.pallas import tpu as pltpu


def _round_up(x, m):
    return (x + m - 1) // m * m


def _choose_tile_m(n_rows, target=256):
    # >= 2 grid steps whenever rows allow (megacore on v7x); rows per tile must
    # be a multiple of 8 sublanes.  target=256 amortizes per-step overhead on
    # v5e/v6e and still fits comfortably in v7x's 64 MiB budget at these widths.
    half = _round_up(max((n_rows + 1) // 2, 8), 8)
    return min(target, half)


def _vmem_limit_bytes():
    # Generation-dependent VMEM budget: 3/4 of physical capacity, capped at 96 MiB.
    try:
        cap = pltpu.get_tpu_info().vmem_capacity_bytes
    except Exception:
        cap = 64 * 1024 * 1024
    return min(cap * 3 // 4, 96 * 1024 * 1024)


# ----------------------------- Pallas kernel --------------------------------
def mlp_kernel(ids_ref,                      # (n_pad,) i32, SMEM (scalar prefetch)
               emb_hbm,                      # (V, E) f32, HBM (pl.ANY)
               w1_ref, b1_ref, w2_ref, b2_ref, w3_ref, b3_ref,   # VMEM consts
               o_ref,                        # (tile_m, t_pad) f32 VMEM
               x_vmem,                       # scratch (tile_m, E) f32
               sem):                         # DMA semaphores (tile_m,)
    tile_m = o_ref.shape[0]
    base = pl.program_id(0) * tile_m

    # --- Embedding gather: one row DMA per token, issue all, then wait all. ---
    @pl.loop(0, tile_m)
    def _(r):
        tok = ids_ref[base + r]
        pltpu.make_async_copy(emb_hbm.at[tok], x_vmem.at[r], sem.at[r]).start()

    @pl.loop(0, tile_m)
    def _(r):
        pltpu.make_async_copy(emb_hbm.at[0], x_vmem.at[r], sem.at[r]).wait()

    x = x_vmem[...]                                              # (tile_m, E) f32

    # fc1 + relu   (bf16 operands, f32 accumulate)
    h1 = jnp.dot(x.astype(w1_ref.dtype), w1_ref[...],
                 preferred_element_type=jnp.float32) + b1_ref[...]
    h1 = jnp.maximum(h1, 0.0)
    # TODO(synk): training-mode dropout (p=0.5) omitted; inference identity.

    # fc2 + relu
    h2 = jnp.dot(h1.astype(w2_ref.dtype), w2_ref[...],
                 preferred_element_type=jnp.float32) + b2_ref[...]
    h2 = jnp.maximum(h2, 0.0)

    # fc3 (tag dim zero-padded to 8 -> small writeback; f32 to match x.float())
    o = jnp.dot(h2.astype(w3_ref.dtype), w3_ref[...],
                preferred_element_type=jnp.float32) + b3_ref[...]
    o_ref[...] = o.astype(o_ref.dtype)


def mlp_emissions(ids_1d, emb_tbl, w1, b1, w2, b2, w3, b3, *, tile_m):
    """ids_1d: (n_pad,) int32 -> emissions (n_pad, t_pad) float32."""
    n_pad = ids_1d.shape[0]
    v, e = emb_tbl.shape
    h = w1.shape[1]
    h2 = w2.shape[1]
    t_pad = w3.shape[1]
    grid = (n_pad // tile_m,)

    flops = 2 * n_pad * (e * h + h * h2 + h2 * t_pad)
    bytes_accessed = (4 * n_pad                              # token ids
                      + 4 * n_pad * e                        # gathered f32 rows
                      + 2 * (e * h + h * h2 + h2 * t_pad)    # bf16 weights (once)
                      + 4 * (h + h2 + t_pad)                 # f32 biases (once)
                      + 4 * n_pad * t_pad)                   # f32 emissions out

    once = pl.Buffered(1)   # constant blocks: fetch once, no double buffer

    return pl.pallas_call(
        mlp_kernel,
        out_shape=jax.ShapeDtypeStruct((n_pad, t_pad), jnp.float32),
        grid_spec=pltpu.PrefetchScalarGridSpec(
            num_scalar_prefetch=1,                 # token ids -> SMEM
            grid=grid,
            in_specs=[
                pl.BlockSpec(memory_space=pl.ANY),                                 # emb table in HBM
                pl.BlockSpec((e, h), lambda i, ids: (0, 0), pipeline_mode=once),   # w1 (bf16)
                pl.BlockSpec((1, h), lambda i, ids: (0, 0), pipeline_mode=once),   # b1
                pl.BlockSpec((h, h2), lambda i, ids: (0, 0), pipeline_mode=once),  # w2 (bf16)
                pl.BlockSpec((1, h2), lambda i, ids: (0, 0), pipeline_mode=once),  # b2
                pl.BlockSpec((h2, t_pad), lambda i, ids: (0, 0), pipeline_mode=once),  # w3 (bf16)
                pl.BlockSpec((1, t_pad), lambda i, ids: (0, 0), pipeline_mode=once),   # b3
            ],
            out_specs=pl.BlockSpec((tile_m, t_pad), lambda i, ids: (i, 0)),
            scratch_shapes=[
                pltpu.VMEM((tile_m, e), jnp.float32),        # gathered embedding rows
                pltpu.SemaphoreType.DMA((tile_m,)),          # one sem per row DMA
            ],
        ),
        compiler_params=pltpu.CompilerParams(
            dimension_semantics=("parallel",),
            vmem_limit_bytes=_vmem_limit_bytes()),
        cost_estimate=pl.CostEstimate(
            flops=flops, transcendentals=0, bytes_accessed=bytes_accessed),
    )(ids_1d, emb_tbl, w1, b1, w2, b2, w3, b3)


# ----------------------------- CRF decode (glue) -----------------------------
def crf_decode(emissions, start_trans, end_trans, trans):
    """Viterbi decode, batch_first, no mask.  emissions: (B,S,T) -> (B,S) i32."""
    em_t = jnp.moveaxis(emissions, 1, 0)                    # (S, B, T)
    score0 = start_trans[None, :] + em_t[0]                 # (B, T)

    def fwd(score, emit_t):
        ns = score[:, :, None] + trans[None, :, :] + emit_t[:, None, :]
        return jnp.max(ns, axis=1), jnp.argmax(ns, axis=1).astype(jnp.int32)

    score, history = lax.scan(fwd, score0, em_t[1:])        # history: (S-1, B, T)
    score = score + end_trans[None, :]
    best_last = jnp.argmax(score, axis=1).astype(jnp.int32) # (B,)

    def bwd(best, idx_t):
        prev = jnp.take_along_axis(idx_t, best[:, None], axis=1)[:, 0]
        return prev, prev

    _, tags_prefix = lax.scan(bwd, best_last, history, reverse=True)  # (S-1, B)
    tags = jnp.concatenate([tags_prefix, best_last[None, :]], axis=0) # (S, B)
    return tags.T.astype(jnp.int32)


# ----------------------------- Param prep (once, outside the hot path) -------
def prepare_params(params):
    """Pad/cast parameters once so per-call forward only runs kernel + decode."""
    emb_tbl, w1, b1, w2, b2, w3, b3, st, et, tr = params
    T = w3.shape[1]
    t_pad = _round_up(T, 8)   # tag dim padded only to 8 -> small output writeback
    w3_p = jnp.zeros((w3.shape[0], t_pad), jnp.float32).at[:, :T].set(w3)
    b3_p = jnp.zeros((1, t_pad), jnp.float32).at[:, :T].set(b3)
    kparams = (emb_tbl.astype(jnp.float32),
               w1.astype(jnp.bfloat16), b1.astype(jnp.float32),
               w2.astype(jnp.bfloat16), b2.astype(jnp.float32),
               w3_p.astype(jnp.bfloat16), b3_p.astype(jnp.float32))
    crf_params = (st, et, tr)
    return kparams, crf_params


# ----------------------------- Full forward ----------------------------------
@jax.jit
def mlp_forward(x_ids, kparams, crf_params):
    emb_tbl, w1, b1, w2, b2, w3_p, b3_p = kparams
    st, et, tr = crf_params
    B, S = x_ids.shape
    T = st.shape[0]
    N = B * S

    tile_m = _choose_tile_m(N)
    n_pad = _round_up(N, tile_m)
    # Pad ids with 0 (a valid vocab row); padded output rows are sliced away.
    ids = jnp.zeros((n_pad,), jnp.int32).at[:N].set(x_ids.reshape(-1))

    emissions_pad = mlp_emissions(ids, emb_tbl, w1, b1, w2, b2, w3_p, b3_p,
                                  tile_m=tile_m)
    emissions = emissions_pad[:N, :T].reshape(B, S, T).astype(jnp.float32)
    # tags=None path: CRF Viterbi decode
    return crf_decode(emissions, st, et, tr)


# ----------------------------- Param init ------------------------------------
def init_params(key, vocab_size, embedding_dim, hidden_dim, tagset_size):
    h2 = math.ceil(hidden_dim / 2)
    ks = jax.random.split(key, 10)
    emb_tbl = jax.random.normal(ks[0], (vocab_size, embedding_dim), jnp.float32)

    def linear(kw, kb, fan_in, fan_out):
        bound = 1.0 / math.sqrt(fan_in)
        w = jax.random.uniform(kw, (fan_in, fan_out), jnp.float32, -bound, bound)
        b = jax.random.uniform(kb, (1, fan_out), jnp.float32, -bound, bound)
        return w, b

    w1, b1 = linear(ks[1], ks[2], embedding_dim, hidden_dim)
    w2, b2 = linear(ks[3], ks[4], hidden_dim, h2)
    w3, b3 = linear(ks[5], ks[6], h2, tagset_size)
    # torchcrf init: uniform(-0.1, 0.1)
    st = jax.random.uniform(ks[7], (tagset_size,), jnp.float32, -0.1, 0.1)
    et = jax.random.uniform(ks[8], (tagset_size,), jnp.float32, -0.1, 0.1)
    tr = jax.random.uniform(ks[9], (tagset_size, tagset_size), jnp.float32, -0.1, 0.1)
    return (emb_tbl, w1, b1, w2, b2, w3, b3, st, et, tr)


# ----------------------------- Main -------------------------------------------
if __name__ == "__main__":
    vocab_size, embedding_dim, hidden_dim, tagset_size = 50, 32, 32, 5
    B, S = 2, 8

    key = jax.random.PRNGKey(0)
    k_params, k_ids = jax.random.split(key)
    params = init_params(k_params, vocab_size, embedding_dim, hidden_dim, tagset_size)
    kparams, crf_params = prepare_params(params)   # pad/cast once, off the hot path
    x_ids = jax.random.randint(k_ids, (B, S), 0, vocab_size, dtype=jnp.int32)

    tags = mlp_forward(x_ids, kparams, crf_params)
    jax.block_until_ready(tags)
    assert tags.shape == (B, S)
    print("KERNEL_OK")
</pallas_src>

<mosaic_0001>
module attributes {stable_mosaic.version = 11 : i64} {
  func.func @mlp_kernel(%arg0: i32, %arg1: memref<16xi32, #tpu.memory_space<smem>>, %arg2: memref<50x32xf32, #tpu.memory_space<any>>, %arg3: memref<32x32xbf16, #tpu.memory_space<vmem>>, %arg4: memref<1x32xf32, #tpu.memory_space<vmem>>, %arg5: memref<32x16xbf16, #tpu.memory_space<vmem>>, %arg6: memref<1x16xf32, #tpu.memory_space<vmem>>, %arg7: memref<16x8xbf16, #tpu.memory_space<vmem>>, %arg8: memref<1x8xf32, #tpu.memory_space<vmem>>, %arg9: memref<8x8xf32, #tpu.memory_space<vmem>>, %arg10: memref<8x32xf32, #tpu.memory_space<vmem>>, %arg11: memref<8x!tpu.dma_semaphore, #tpu.memory_space<semaphore_mem>>) attributes {dimension_semantics = [#tpu.dimension_semantics<parallel>], iteration_bounds = array<i64: 2>, scalar_prefetch = 1 : i64, scratch_operands = 2 : i64, tpu.core_type = #tpu.core_type<tc>, window_params = [{}, {pipeline_mode = #tpu.pipeline_mode<synchronous>, transform_indices = @transform_1, window_bounds = array<i64: 32, 32>}, {pipeline_mode = #tpu.pipeline_mode<synchronous>, transform_indices = @transform_2, window_bounds = array<i64: 1, 32>}, {pipeline_mode = #tpu.pipeline_mode<synchronous>, transform_indices = @transform_3, window_bounds = array<i64: 32, 16>}, {pipeline_mode = #tpu.pipeline_mode<synchronous>, transform_indices = @transform_4, window_bounds = array<i64: 1, 16>}, {pipeline_mode = #tpu.pipeline_mode<synchronous>, transform_indices = @transform_5, window_bounds = array<i64: 16, 8>}, {pipeline_mode = #tpu.pipeline_mode<synchronous>, transform_indices = @transform_6, window_bounds = array<i64: 1, 8>}, {transform_indices = @transform_7, window_bounds = array<i64: 8, 8>}]} {
    %c8_i32 = arith.constant 8 : i32
    %0 = arith.muli %arg0, %c8_i32 : i32
    %c0_i32 = arith.constant 0 : i32
    %c8_i32_0 = arith.constant 8 : i32
    %1 = arith.addi %c0_i32, %c8_i32_0 : i32
    %c1_i32 = arith.constant 1 : i32
    scf.for %arg12 = %c0_i32 to %1 step %c1_i32  : i32 {
      %c1_i32_25 = arith.constant 1 : i32
      %27 = arith.muli %arg12, %c1_i32_25 : i32
      %c0_i32_26 = arith.constant 0 : i32
      %28 = arith.addi %c0_i32_26, %27 : i32
      %29 = arith.addi %0, %28 : i32
      %30 = arith.index_cast %29 : i32 to index
      %31 = memref.load %arg1[%30] : memref<16xi32, #tpu.memory_space<smem>>
      %c0_i32_27 = arith.constant 0 : i32
      %32 = tpu.memref_slice %arg2[%31, %c0_i32_27] : memref<50x32xf32, #tpu.memory_space<any>> -> memref<1x32xf32, #tpu.memory_space<any>>
      %33 = tpu.memref_squeeze %32 : memref<1x32xf32, #tpu.memory_space<any>> -> memref<32xf32, #tpu.memory_space<any>>
      %c0_i32_28 = arith.constant 0 : i32
      %34 = tpu.memref_slice %arg10[%28, %c0_i32_28] : memref<8x32xf32, #tpu.memory_space<vmem>> -> memref<1x32xf32, #tpu.memory_space<vmem>>
      %35 = tpu.memref_squeeze %34 : memref<1x32xf32, #tpu.memory_space<vmem>> -> memref<32xf32, #tpu.memory_space<vmem>>
      %36 = tpu.memref_slice %arg11[%28] : memref<8x!tpu.dma_semaphore, #tpu.memory_space<semaphore_mem>> -> memref<1x!tpu.dma_semaphore, #tpu.memory_space<semaphore_mem>>
      %37 = tpu.memref_squeeze %36 : memref<1x!tpu.dma_semaphore, #tpu.memory_space<semaphore_mem>> -> memref<!tpu.dma_semaphore, #tpu.memory_space<semaphore_mem>>
      tpu.enqueue_dma source(%33 : memref<32xf32, #tpu.memory_space<any>>) target(%35 : memref<32xf32, #tpu.memory_space<vmem>>) target_semaphore(%37 : memref<!tpu.dma_semaphore, #tpu.memory_space<semaphore_mem>>)
    }
    %c8_i32_1 = arith.constant 8 : i32
    %c0_i32_2 = arith.constant 0 : i32
    %c8_i32_3 = arith.constant 8 : i32
    %2 = arith.addi %c0_i32_2, %c8_i32_3 : i32
    %c1_i32_4 = arith.constant 1 : i32
    scf.for %arg12 = %c0_i32_2 to %2 step %c1_i32_4  : i32 {
      %c1_i32_25 = arith.constant 1 : i32
      %27 = arith.muli %arg12, %c1_i32_25 : i32
      %c0_i32_26 = arith.constant 0 : i32
      %28 = arith.addi %c0_i32_26, %27 : i32
      %c0_i32_27 = arith.constant 0 : i32
      %c0_i32_28 = arith.constant 0 : i32
      %29 = tpu.memref_slice %arg2[%c0_i32_27, %c0_i32_28] : memref<50x32xf32, #tpu.memory_space<any>> -> memref<1x32xf32, #tpu.memory_space<any>>
      %30 = tpu.memref_squeeze %29 : memref<1x32xf32, #tpu.memory_space<any>> -> memref<32xf32, #tpu.memory_space<any>>
      %c0_i32_29 = arith.constant 0 : i32
      %31 = tpu.memref_slice %arg10[%28, %c0_i32_29] : memref<8x32xf32, #tpu.memory_space<vmem>> -> memref<1x32xf32, #tpu.memory_space<vmem>>
      %32 = tpu.memref_squeeze %31 : memref<1x32xf32, #tpu.memory_space<vmem>> -> memref<32xf32, #tpu.memory_space<vmem>>
      %33 = tpu.memref_slice %arg11[%28] : memref<8x!tpu.dma_semaphore, #tpu.memory_space<semaphore_mem>> -> memref<1x!tpu.dma_semaphore, #tpu.memory_space<semaphore_mem>>
      %34 = tpu.memref_squeeze %33 : memref<1x!tpu.dma_semaphore, #tpu.memory_space<semaphore_mem>> -> memref<!tpu.dma_semaphore, #tpu.memory_space<semaphore_mem>>
      tpu.wait_dma2 semaphore(%34 : memref<!tpu.dma_semaphore, #tpu.memory_space<semaphore_mem>>) src(%30 : memref<32xf32, #tpu.memory_space<any>>) dst(%32 : memref<32xf32, #tpu.memory_space<vmem>>)
    }
    %c8_i32_5 = arith.constant 8 : i32
    %c0 = arith.constant 0 : index
    %c0_6 = arith.constant 0 : index
    %3 = vector.load %arg10[%c0, %c0_6] : memref<8x32xf32, #tpu.memory_space<vmem>>, vector<8x32xf32>
    %4 = arith.truncf %3 : vector<8x32xf32> to vector<8x32xbf16>
    %c0_7 = arith.constant 0 : index
    %c0_8 = arith.constant 0 : index
    %5 = vector.load %arg3[%c0_7, %c0_8] : memref<32x32xbf16, #tpu.memory_space<vmem>>, vector<32x32xbf16>
    %cst = arith.constant dense<0.000000e+00> : vector<8x32xf32>
    %6 = tpu.matmul %4, %5, %cst {dimension_numbers = #tpu.dot_dimension_numbers<[1], [0], [0], [1], [0, 0, 1, 1], [], []>} : vector<8x32xbf16>, vector<32x32xbf16>, vector<8x32xf32> -> vector<8x32xf32>
    %c0_9 = arith.constant 0 : index
    %c0_10 = arith.constant 0 : index
    %7 = vector.load %arg4[%c0_9, %c0_10] : memref<1x32xf32, #tpu.memory_space<vmem>>, vector<1x32xf32>
    %8 = vector.broadcast %7 : vector<1x32xf32> to vector<8x32xf32>
    %9 = arith.addf %6, %8 : vector<8x32xf32>
    %cst_11 = arith.constant 0.000000e+00 : f32
    %10 = vector.broadcast %cst_11 : f32 to vector<8x32xf32>
    %11 = arith.maximumf %9, %10 : vector<8x32xf32>
    %12 = arith.truncf %11 : vector<8x32xf32> to vector<8x32xbf16>
    %c0_12 = arith.constant 0 : index
    %c0_13 = arith.constant 0 : index
    %13 = vector.load %arg5[%c0_12, %c0_13] : memref<32x16xbf16, #tpu.memory_space<vmem>>, vector<32x16xbf16>
    %cst_14 = arith.constant dense<0.000000e+00> : vector<8x16xf32>
    %14 = tpu.matmul %12, %13, %cst_14 {dimension_numbers = #tpu.dot_dimension_numbers<[1], [0], [0], [1], [0, 0, 1, 1], [], []>} : vector<8x32xbf16>, vector<32x16xbf16>, vector<8x16xf32> -> vector<8x16xf32>
    %c0_15 = arith.constant 0 : index
    %c0_16 = arith.constant 0 : index
    %15 = vector.load %arg6[%c0_15, %c0_16] : memref<1x16xf32, #tpu.memory_space<vmem>>, vector<1x16xf32>
    %16 = vector.broadcast %15 : vector<1x16xf32> to vector<8x16xf32>
    %17 = arith.addf %14, %16 : vector<8x16xf32>
    %cst_17 = arith.constant 0.000000e+00 : f32
    %18 = vector.broadcast %cst_17 : f32 to vector<8x16xf32>
    %19 = arith.maximumf %17, %18 : vector<8x16xf32>
    %20 = arith.truncf %19 : vector<8x16xf32> to vector<8x16xbf16>
    %c0_18 = arith.constant 0 : index
    %c0_19 = arith.constant 0 : index
    %21 = vector.load %arg7[%c0_18, %c0_19] : memref<16x8xbf16, #tpu.memory_space<vmem>>, vector<16x8xbf16>
    %cst_20 = arith.constant dense<0.000000e+00> : vector<8x8xf32>
    %22 = tpu.matmul %20, %21, %cst_20 {dimension_numbers = #tpu.dot_dimension_numbers<[1], [0], [0], [1], [0, 0, 1, 1], [], []>} : vector<8x16xbf16>, vector<16x8xbf16>, vector<8x8xf32> -> vector<8x8xf32>
    %c0_21 = arith.constant 0 : index
    %c0_22 = arith.constant 0 : index
    %23 = vector.load %arg8[%c0_21, %c0_22] : memref<1x8xf32, #tpu.memory_space<vmem>>, vector<1x8xf32>
    %24 = vector.broadcast %23 : vector<1x8xf32> to vector<8x8xf32>
    %25 = arith.addf %22, %24 : vector<8x8xf32>
    %c0_23 = arith.constant 0 : index
    %c0_24 = arith.constant 0 : index
    %26 = vector.load %arg9[%c0_23, %c0_24] : memref<8x8xf32, #tpu.memory_space<vmem>>, vector<8x8xf32>
    tpu.vector_store %arg9[%c0_23, %c0_24], %25 {strides = array<i32>} : memref<8x8xf32, #tpu.memory_space<vmem>>, vector<8x8xf32>,
    return
  }
  func.func @transform_1(%arg0: i32, %arg1: memref<16xi32, #tpu.memory_space<smem>>) -> (i32, i32) {
    %c0_i32 = arith.constant 0 : i32
    %c0_i32_0 = arith.constant 0 : i32
    %c0_i32_1 = arith.constant 0 : i32
    return %c0_i32, %c0_i32_0 : i32, i32
  }
  func.func @transform_2(%arg0: i32, %arg1: memref<16xi32, #tpu.memory_space<smem>>) -> (i32, i32) {
    %c0_i32 = arith.constant 0 : i32
    %c0_i32_0 = arith.constant 0 : i32
    %c0_i32_1 = arith.constant 0 : i32
    return %c0_i32, %c0_i32_0 : i32, i32
  }
  func.func @transform_3(%arg0: i32, %arg1: memref<16xi32, #tpu.memory_space<smem>>) -> (i32, i32) {
    %c0_i32 = arith.constant 0 : i32
    %c0_i32_0 = arith.constant 0 : i32
    %c0_i32_1 = arith.constant 0 : i32
    return %c0_i32, %c0_i32_0 : i32, i32
  }
  func.func @transform_4(%arg0: i32, %arg1: memref<16xi32, #tpu.memory_space<smem>>) -> (i32, i32) {
    %c0_i32 = arith.constant 0 : i32
    %c0_i32_0 = arith.constant 0 : i32
    %c0_i32_1 = arith.constant 0 : i32
    return %c0_i32, %c0_i32_0 : i32, i32
  }
  func.func @transform_5(%arg0: i32, %arg1: memref<16xi32, #tpu.memory_space<smem>>) -> (i32, i32) {
    %c0_i32 = arith.constant 0 : i32
    %c0_i32_0 = arith.constant 0 : i32
    %c0_i32_1 = arith.constant 0 : i32
    return %c0_i32, %c0_i32_0 : i32, i32
  }
  func.func @transform_6(%arg0: i32, %arg1: memref<16xi32, #tpu.memory_space<smem>>) -> (i32, i32) {
    %c0_i32 = arith.constant 0 : i32
    %c0_i32_0 = arith.constant 0 : i32
    %c0_i32_1 = arith.constant 0 : i32
    return %c0_i32, %c0_i32_0 : i32, i32
  }
  func.func @transform_7(%arg0: i32, %arg1: memref<16xi32, #tpu.memory_space<smem>>) -> (i32, i32) {
    %c0_i32 = arith.constant 0 : i32
    %c0_i32_0 = arith.constant 0 : i32
    return %arg0, %c0_i32 : i32, i32
  }
}

</mosaic_0001>

<llo_original>
// kernel: custom-call.2
$region0: #{custom-call.2}
  %s0 = inlined_call_operand.vmem [shape: s32[7,2,5], index: 0, kind: output, shape index: {}]

// kernel: mlp_forward.1
$region0: #{mlp_forward.1}
  #allocation0 [shape = 'u32[]', space=smem, size = 0x4, offset = 0x4, fixed_abs, tag = 'smem constant byte address 0x4 - core index']
  #allocation1 [shape = 'u32[144,128]{1,0:T(1,128)}', space=vmem, size = 0x12000, scoped, tag = 'internal scratch']
  #allocation2 [shape = 'f32[8,32]{1,0:T(8,128)}', space=vmem, size = 0x1000, scoped, tag = 'scratch operand']
  #allocation3 [shape = 's32[8]{0}', space=sflag, size = 0x20, scoped, tag = 'scratch operand']
  #allocation4 [shape = 's32[1]{0}', space=sflag, size = 0x4, scoped, tag = 'scoped memory for mlp_forward.1']
  #allocation5 [shape = 'u8[512]{0}', space=smem, size = 0x200, scoped, tag = 'prefetched SMEM operand 0']
  #allocation6 [shape = 's32[]', space=sflag, size = 0x4, offset = 0, fixed_abs, tag = 'sflag constant byte address 0x0 - dummy sync flag']
  %s0 = inlined_call_operand.vmem [shape: s32[16], index: 0, kind: input, shape index: {}]
  %s1 = inlined_call_operand.vmem [shape: f32[50,32], index: 1, kind: input, shape index: {}]
  %s2 = inlined_call_operand.vmem [shape: bf16[32,32], index: 2, kind: input, shape index: {}]
  %s3 = inlined_call_operand.vmem [shape: f32[1,32], index: 3, kind: input, shape index: {}]
  %s4 = inlined_call_operand.vmem [shape: bf16[32,16], index: 4, kind: input, shape index: {}]
  %s5 = inlined_call_operand.vmem [shape: f32[1,16], index: 5, kind: input, shape index: {}]
  %s6 = inlined_call_operand.vmem [shape: bf16[16,8], index: 6, kind: input, shape index: {}]
  %s7 = inlined_call_operand.vmem [shape: f32[1,8], index: 7, kind: input, shape index: {}]
  %s8 = inlined_call_operand.vmem [shape: f32[16,8], index: 8, kind: output, shape index: {}]
  %s9 = sld [smem:[#allocation0]]
  $region101: #{mlp_forward.1} parent=0
    _
  %s11 = ssub.s32 1, %s9
  %s12 = scalar_select 0, %s11, %s9
  %s13 = sshll.u32 %s0, 4
  %s14 = int_to_ptr.vmem [resolvable:$true] %s13
  %16 = dma.vmem_to_smem %s14, 16, [#allocation5], [#allocation4]
  %17 = dma.done [#allocation4], 16
  %18 = sfence
  loop: start=0, step=1, limit=4
  $region2: #{mlp_forward.1} parent=0 // loop_pre_header
    _
  $region3: #{mlp_forward.1} parent=0 // loop_header
    %s20 = sphi 0, %s24
    %p21 = scmp.ge.s32.totalorder %s20, 4
    %s28 = sphi 0, %s28
    %s30 = sphi 0, %s28
    %s31 = sphi 0, %s30
    %s45 = sphi 0, %s31
    %s49 = sphi 0, %s49
    %s51 = sphi 0, %s49
    %s52 = sphi 0, %s51
    %s66 = sphi 0, %s52
    %s70 = sphi 0, %s70
    %s72 = sphi 0, %s70
    %s73 = sphi 0, %s72
    %s87 = sphi 0, %s73
    %s91 = sphi 0, %s91
    %s93 = sphi 0, %s91
    %s94 = sphi 0, %s93
    %s108 = sphi 0, %s94
    %s112 = sphi 0, %s112
    %s114 = sphi 0, %s112
    %s115 = sphi 0, %s114
    %s129 = sphi 0, %s115
    %s133 = sphi 0, %s133
    %s135 = sphi 0, %s133
    %s136 = sphi 0, %s135
    %s150 = sphi 0, %s136
    %s156 = sphi 0, %s158
    %s159 = sphi 0, %s156
    %s160 = sphi 0, %s159
    %s176 = sphi 0, %s160
  $region4: #{mlp_forward.1} parent=0 // loop_header_branch
    %23 = sbr.rel (%p21) target = $region8
  $region5: #{mlp_forward.1} parent=0 // loop_body
    %s25 = ssub.s32 %s20, 1
    %s26 = ssub.s32 %s20, 2
    %s27 = sadd.s32 %s20, 1
    %s29 = sadd.s32 %s28, 1
    %p32 = scmp.eq.s32.totalorder %s20, 1
    %p33 = scmp.ne.s32.totalorder %s28, %s30
    %p34 = scmp.eq.s32.totalorder %s20, 0
    %p35 = por %p33, %p34
    %p36 = scmp.ne.s32.totalorder %s28, %s30
    %p37 = scmp.eq.s32.totalorder %s25, 1
    %p38 = por %p36, %p37
    %p39 = scmp.ne.s32.totalorder %s30, %s31
    %p40 = scmp.eq.s32.totalorder %s25, 0
    %p41 = por %p39, %p40
    %p42 = scmp.ne.s32.totalorder %s30, %s31
    %p43 = scmp.eq.s32.totalorder %s26, 1
    %p44 = por %p42, %p43
    %p46 = scmp.ne.s32.totalorder %s31, %s45
    %p47 = scmp.eq.s32.totalorder %s26, 0
    %p48 = por %p46, %p47
    %s50 = sadd.s32 %s49, 1
    %p53 = scmp.eq.s32.totalorder %s20, 1
    %p54 = scmp.ne.s32.totalorder %s49, %s51
    %p55 = scmp.eq.s32.totalorder %s20, 0
    %p56 = por %p54, %p55
    %p57 = scmp.ne.s32.totalorder %s49, %s51
    %p58 = scmp.eq.s32.totalorder %s25, 1
    %p59 = por %p57, %p58
    %p60 = scmp.ne.s32.totalorder %s51, %s52
    %p61 = scmp.eq.s32.totalorder %s25, 0
    %p62 = por %p60, %p61
    %p63 = scmp.ne.s32.totalorder %s51, %s52
    %p64 = scmp.eq.s32.totalorder %s26, 1
    %p65 = por %p63, %p64
    %p67 = scmp.ne.s32.totalorder %s52, %s66
    %p68 = scmp.eq.s32.totalorder %s26, 0
    %p69 = por %p67, %p68
    %s71 = sadd.s32 %s70, 1
    %p74 = scmp.eq.s32.totalorder %s20, 1
    %p75 = scmp.ne.s32.totalorder %s70, %s72
    %p76 = scmp.eq.s32.totalorder %s20, 0
    %p77 = por %p75, %p76
    %p78 = scmp.ne.s32.totalorder %s70, %s72
    %p79 = scmp.eq.s32.totalorder %s25, 1
    %p80 = por %p78, %p79
    %p81 = scmp.ne.s32.totalorder %s72, %s73
    %p82 = scmp.eq.s32.totalorder %s25, 0
    %p83 = por %p81, %p82
    %p84 = scmp.ne.s32.totalorder %s72, %s73
    %p85 = scmp.eq.s32.totalorder %s26, 1
    %p86 = por %p84, %p85
    %p88 = scmp.ne.s32.totalorder %s73, %s87
    %p89 = scmp.eq.s32.totalorder %s26, 0
    %p90 = por %p88, %p89
    %s92 = sadd.s32 %s91, 1
    %p95 = scmp.eq.s32.totalorder %s20, 1
    %p96 = scmp.ne.s32.totalorder %s91, %s93
    %p97 = scmp.eq.s32.totalorder %s20, 0
    %p98 = por %p96, %p97
    %p99 = scmp.ne.s32.totalorder %s91, %s93
    %p100 = scmp.eq.s32.totalorder %s25, 1
    %p101 = por %p99, %p100
    %p102 = scmp.ne.s32.totalorder %s93, %s94
    %p103 = scmp.eq.s32.totalorder %s25, 0
    %p104 = por %p102, %p103
    %p105 = scmp.ne.s32.totalorder %s93, %s94
    %p106 = scmp.eq.s32.totalorder %s26, 1
    %p107 = por %p105, %p106
    %p109 = scmp.ne.s32.totalorder %s94, %s108
    %p110 = scmp.eq.s32.totalorder %s26, 0
    %p111 = por %p109, %p110
    %s113 = sadd.s32 %s112, 1
    %p116 = scmp.eq.s32.totalorder %s20, 1
    %p117 = scmp.ne.s32.totalorder %s112, %s114
    %p118 = scmp.eq.s32.totalorder %s20, 0
    %p119 = por %p117, %p118
    %p120 = scmp.ne.s32.totalorder %s112, %s114
    %p121 = scmp.eq.s32.totalorder %s25, 1
    %p122 = por %p120, %p121
    %p123 = scmp.ne.s32.totalorder %s114, %s115
    %p124 = scmp.eq.s32.totalorder %s25, 0
    %p125 = por %p123, %p124
    %p126 = scmp.ne.s32.totalorder %s114, %s115
    %p127 = scmp.eq.s32.totalorder %s26, 1
    %p128 = por %p126, %p127
    %p130 = scmp.ne.s32.totalorder %s115, %s129
    %p131 = scmp.eq.s32.totalorder %s26, 0
    %p132 = por %p130, %p131
    %s134 = sadd.s32 %s133, 1
    %p137 = scmp.eq.s32.totalorder %s20, 1
    %p138 = scmp.ne.s32.totalorder %s133, %s135
    %p139 = scmp.eq.s32.totalorder %s20, 0
    %p140 = por %p138, %p139
    %p141 = scmp.ne.s32.totalorder %s133, %s135
    %p142 = scmp.eq.s32.totalorder %s25, 1
    %p143 = por %p141, %p142
    %p144 = scmp.ne.s32.totalorder %s135, %s136
    %p145 = scmp.eq.s32.totalorder %s25, 0
    %p146 = por %p144, %p145
    %p147 = scmp.ne.s32.totalorder %s135, %s136
    %p148 = scmp.eq.s32.totalorder %s26, 1
    %p149 = por %p147, %p148
    %p151 = scmp.ne.s32.totalorder %s136, %s150
    %p152 = scmp.eq.s32.totalorder %s26, 0
    %p153 = por %p151, %p152
    %s154 = ssub.s32 %s20, %s27
    %p155 = scmp.eq.s32.totalorder %s154, 0
    %s157 = sadd.s32 %s156, 1
    %s158 = scalar_select %p155, %s156, %s157
    %p161 = pneg %p155
    %p162 = scmp.eq.s32.totalorder %s20, 1
    %p163 = por %p161, %p162
    %p164 = scmp.ne.s32.totalorder %s156, %s159
    %p165 = scmp.eq.s32.totalorder %s20, 0
    %p166 = por %p164, %p165
    %p167 = scmp.ne.s32.totalorder %s156, %s159
    %p168 = scmp.eq.s32.totalorder %s25, 1
    %p169 = por %p167, %p168
    %p170 = scmp.ne.s32.totalorder %s159, %s160
    %p171 = scmp.eq.s32.totalorder %s25, 0
    %p172 = por %p170, %p171
    %p173 = scmp.ne.s32.totalorder %s159, %s160
    %p174 = scmp.eq.s32.totalorder %s26, 1
    %p175 = por %p173, %p174
    %p177 = scmp.ne.s32.totalorder %s160, %s176
    %p178 = scmp.eq.s32.totalorder %s26, 0
    %p179 = por %p177, %p178
    %p180 = scmp.le.s32.totalorder 1, %s20
    %p181 = scmp.lt.s32.totalorder %s20, 3
    %p182 = pnand %p180, %p181
    %p183 = pneg %p182
    // Predicated region
    $region9: #{mlp_forward.1} parent=5 // pred_check
      _
    $region10: #{mlp_forward.1} parent=5 // pred_check_branch
      %185 = sbr.rel (%p182) target = $region12
    $region11: #{mlp_forward.1} parent=5 // pred_region
      %s186 = ssub.s32 %s20, 1
      // Predicated region
      $region13: #{mlp_forward.1} parent=11 // pred_check
        %p187 = pneg %p41
      $region14: #{mlp_forward.1} parent=11 // pred_check_branch
        %189 = sbr.rel (%p187) target = $region16
      $region15: #{mlp_forward.1} parent=11 // pred_region
        _
      $region16: #{mlp_forward.1} parent=11 // pred_fallthru
        _
      // Predicated region
      $region17: #{mlp_forward.1} parent=11 // pred_check
        %p190 = pneg %p62
      $region18: #{mlp_forward.1} parent=11 // pred_check_branch
        %192 = sbr.rel (%p190) target = $region20
      $region19: #{mlp_forward.1} parent=11 // pred_region
        _
      $region20: #{mlp_forward.1} parent=11 // pred_fallthru
        _
      // Predicated region
      $region21: #{mlp_forward.1} parent=11 // pred_check
        %p193 = pneg %p83
      $region22: #{mlp_forward.1} parent=11 // pred_check_branch
        %195 = sbr.rel (%p193) target = $region24
      $region23: #{mlp_forward.1} parent=11 // pred_region
        _
      $region24: #{mlp_forward.1} parent=11 // pred_fallthru
        _
      // Predicated region
      $region25: #{mlp_forward.1} parent=11 // pred_check
        %p196 = pneg %p104
      $region26: #{mlp_forward.1} parent=11 // pred_check_branch
        %198 = sbr.rel (%p196) target = $region28
      $region27: #{mlp_forward.1} parent=11 // pred_region
        _
      $region28: #{mlp_forward.1} parent=11 // pred_fallthru
        _
      // Predicated region
      $region29: #{mlp_forward.1} parent=11 // pred_check
        %p199 = pneg %p125
      $region30: #{mlp_forward.1} parent=11 // pred_check_branch
        %201 = sbr.rel (%p199) target = $region32
      $region31: #{mlp_forward.1} parent=11 // pred_region
        _
      $region32: #{mlp_forward.1} parent=11 // pred_fallthru
        _
      // Predicated region
      $region33: #{mlp_forward.1} parent=11 // pred_check
        %p202 = pneg %p146
      $region34: #{mlp_forward.1} parent=11 // pred_check_branch
        %204 = sbr.rel (%p202) target = $region36
      $region35: #{mlp_forward.1} parent=11 // pred_region
        _
      $region36: #{mlp_forward.1} parent=11 // pred_fallthru
        _
    $region12: #{mlp_forward.1} parent=5 // pred_fallthru
      _
    %p205 = scmp.lt.s32.totalorder %s20, 2
    // Predicated region
    $region37: #{mlp_forward.1} parent=5 // pred_check
      %p206 = pneg %p205
    $region38: #{mlp_forward.1} parent=5 // pred_check_branch
      %208 = sbr.rel (%p206) target = $region40
    $region39: #{mlp_forward.1} parent=5 // pred_region
      _
    $region40: #{mlp_forward.1} parent=5 // pred_fallthru
      _
    %p209 = scmp.le.s32.totalorder 1, %s20
    %p210 = scmp.lt.s32.totalorder %s20, 3
    %p211 = pnand %p209, %p210
    %p212 = pneg %p211
    // Predicated region
    $region41: #{mlp_forward.1} parent=5 // pred_check
      _
    $region42: #{mlp_forward.1} parent=5 // pred_check_branch
      %214 = sbr.rel (%p211) target = $region44
    $region43: #{mlp_forward.1} parent=5 // pred_region
      %s215 = ssub.s32 %s20, 1
      %p216 = pneg %p41
      %p217 = pneg %p38
      %p218 = pneg %p62
      %p219 = pneg %p59
      %p220 = pneg %p83
      %p221 = pneg %p80
      %p222 = pneg %p104
      %p223 = pneg %p101
      %p224 = pneg %p125
      %p225 = pneg %p122
      %p226 = pneg %p146
      %p227 = pneg %p143
      %p228 = pneg %p172
      %p229 = pneg %p169
      %p230 = scmp.lt.s32.totalorder %s25, 1
      %s231 = scalar_select %p230, %s25, 1
      %s232 = smul.addr %s231, 8
      %s233 = scalar_lea.vmem %s8, %s232
      %p234 = scmp.lt.s32.totalorder %s25, 1
      %s235 = scalar_select %p234, %s25, 1
      %s236 = smul.addr %s235, 8
      %s237 = scalar_lea.vmem %s8, %s236
      %s239 = smul.u32 %s25, 8
      loop: start=0, step=1, limit=8
      $region45: #{mlp_forward.1} parent=43 // loop_pre_header
        _
      $region46: #{mlp_forward.1} parent=43 // loop_header
        %s241 = sphi 0, %s245
        %p242 = scmp.ge.s32.totalorder %s241, 8
      $region47: #{mlp_forward.1} parent=43 // loop_header_branch
        %244 = sbr.rel (%p242) target = $region51
      $region48: #{mlp_forward.1} parent=43 // loop_body
        %s246 = sadd.s32 %s239, %s241
        %s247 = sld [smem:[#allocation5 + %s246]]
        %s248 = scalar_lea.vmem %s1, %s247
        %s249 = scalar_lea.vmem [#allocation2], %s241
        %s250 = scalar_lea.sflag [#allocation3], %s241
        %p252 = scmp.lt.u32.totalorder 1, 8
        %p253 = pneg %p252
        // Predicated region
        $region52: #{mlp_forward.1} parent=48 // pred_check
          _
        $region53: #{mlp_forward.1} parent=48 // pred_check_branch
          %255 = sbr.rel (%p252) target = $region55
        $region54: #{mlp_forward.1} parent=48 // pred_region
          %s271 = sand.u32 1, 7
          %p272 = scmp.eq.s32.totalorder %s271, 0
          %p273 = pneg %p272
          // Predicated region
          $region67: #{mlp_forward.1} parent=54 // pred_check
            _
          $region68: #{mlp_forward.1} parent=54 // pred_check_branch
            %275 = sbr.rel (%p272) target = $region70
          $region69: #{mlp_forward.1} parent=54 // pred_region
            %s276 = sand.u32 1, 7
            %s277 = ssub.s32 1, %s276
            %s278 = scalar_lea.vmem %s248, %s277
            %s279 = ssub.s32 1, %s276
            %s280 = scalar_lea.vmem %s249, %s279 [#allocation2]
            %s281 = sshll.u32 1, %s276
            %s282 = ssub.s32 %s281, 1
            loop: start=0, step=1, limit=1
            $region71: #{mlp_forward.1} parent=69 // loop_pre_header
              _
            $region72: #{mlp_forward.1} parent=69 // loop_header
              %s284 = sphi 0, %s288
              %p285 = scmp.ge.s32.totalorder %s284, 1
              %s289 = sphi %s278, %s278
              %s290 = sphi %s280, %s280
            $region73: #{mlp_forward.1} parent=69 // loop_header_branch
              %287 = sbr.rel (%p285) target = $region77
            $region74: #{mlp_forward.1} parent=69 // loop_body
              %v291 = vld [vmem:[%s289] sm:%s282]
              %292 = vst [vmem:[%s290] sm:%s282] %v291
            $region75: #{mlp_forward.1} parent=69 // loop_footer
              %s288 = sadd.s32 1, %s284
            $region76: #{mlp_forward.1} parent=69 // loop_footer_branch
              %283 = sbr.rel target = $region72
            $region77: #{mlp_forward.1} parent=69 // loop_exit
              _
          $region70: #{mlp_forward.1} parent=54 // pred_fallthru
            _
        $region55: #{mlp_forward.1} parent=48 // pred_fallthru
          _
        // Predicated region
        $region56: #{mlp_forward.1} parent=48 // pred_check
          %p256 = pneg %p252
        $region57: #{mlp_forward.1} parent=48 // pred_check_branch
          %258 = sbr.rel (%p256) target = $region59
        $region58: #{mlp_forward.1} parent=48 // pred_region
          %s259 = sshll.u32 1, 1
          %s260 = ssub.s32 %s259, 1
          loop: start=0, step=1, limit=1
          $region60: #{mlp_forward.1} parent=58 // loop_pre_header
            _
          $region61: #{mlp_forward.1} parent=58 // loop_header
            %s262 = sphi 0, %s266
            %p263 = scmp.ge.s32.totalorder %s262, 1
            %s267 = sphi %s248, %s248
            %s268 = sphi %s249, %s249
          $region62: #{mlp_forward.1} parent=58 // loop_header_branch
            %265 = sbr.rel (%p263) target = $region66
          $region63: #{mlp_forward.1} parent=58 // loop_body
            %v269 = vld [vmem:[%s267] sm:%s260]
            %270 = vst [vmem:[%s268] sm:%s260] %v269
          $region64: #{mlp_forward.1} parent=58 // loop_footer
            %s266 = sadd.s32 1, %s262
          $region65: #{mlp_forward.1} parent=58 // loop_footer_branch
            %261 = sbr.rel target = $region61
          $region66: #{mlp_forward.1} parent=58 // loop_exit
            _
        $region59: #{mlp_forward.1} parent=48 // pred_fallthru
          _
        // Predicated region
        $region78: #{mlp_forward.1} parent=48 // pred_check
          _
        $region79: #{mlp_forward.1} parent=48 // pred_check_branch
          %295 = sbr.rel (0) target = $region81
        $region80: #{mlp_forward.1} parent=48 // pred_region
          %296 = vsyncadd %s250, 16
        $region81: #{mlp_forward.1} parent=48 // pred_fallthru
          _
      $region49: #{mlp_forward.1} parent=43 // loop_footer
        %s245 = sadd.s32 1, %s241
      $region50: #{mlp_forward.1} parent=43 // loop_footer_branch
        %240 = sbr.rel target = $region46
      $region51: #{mlp_forward.1} parent=43 // loop_exit
        _
      loop: start=0, step=1, limit=8
      $region82: #{mlp_forward.1} parent=43 // loop_pre_header
        _
      $region83: #{mlp_forward.1} parent=43 // loop_header
        %s298 = sphi 0, %s302
        %p299 = scmp.ge.s32.totalorder %s298, 8
      $region84: #{mlp_forward.1} parent=43 // loop_header_branch
        %301 = sbr.rel (%p299) target = $region88
      $region85: #{mlp_forward.1} parent=43 // loop_body
        %s303 = scalar_lea.sflag [#allocation3], %s298
        %305 = dma.done %s303, 16
      $region86: #{mlp_forward.1} parent=43 // loop_footer
        %s302 = sadd.s32 1, %s298
      $region87: #{mlp_forward.1} parent=43 // loop_footer_branch
        %297 = sbr.rel target = $region83
      $region88: #{mlp_forward.1} parent=43 // loop_exit
        _
      %v306 = vld [vmem:[#allocation2] sm:$0xff]
      %v307 = vpack.c.bf16 %v306, %v306
      %v308 = vld [vmem:[%s2] sm:$0xf]
      %v309 = vld [vmem:[%s2 + $0x4] sm:$0xf]
      %v310 = vld [vmem:[%s2 + $0x8] sm:$0xf]
      %v311 = vld [vmem:[%s2 + $0xc] sm:$0xf]
      %v312 = vld [vmem:[%s3] sm:$0x1]
      %v314 = vlaneseq
      %v315 = vshrl.u32 %v314, 7
      %v316 = vsub.s32 0, %v315
      %v317 = vrot.slane %v312, %v316
      %v323 = vunpack.c.l.b16 %v308
      %v324 = vunpack.c.l.b16 %v309
      %v325 = vunpack.c.l.b16 %v310
      %v326 = vunpack.c.l.b16 %v311
      %v327 = vpack.c.b16 %v324, %v323
      %v328 = vpack.c.b16 %v326, %v325
      %vm331 = vcmask 261120
      %v333 = vsel %vm331, %v307, 0
      %335 = vmatprep.subr.bf16.mxu0 0
      %336 = vmatpush1.bf16.msra.mxu0 0
      %337 = vmatprep.subr.bf16.mxu0 0
      %338 = vmatpush1.bf16.msra.mxu0 0
      %339 = vmatprep.subr.bf16.mxu0 0
      %340 = vmatpush1.bf16.msra.mxu0 0
      %341 = vmatprep.subr.bf16.mxu0 0
      %342 = vmatpush1.bf16.msra.mxu0 0
      %343 = vmatprep.subr.bf16.mxu0 0
      %344 = vmatpush1.bf16.msra.mxu0 0
      %345 = vmatprep.subr.bf16.mxu0 0
      %346 = vmatpush1.bf16.msra.mxu0 0
      %347 = vmatprep.subr.bf16.mxu0 0
      %348 = vmatpush1.bf16.msra.mxu0 %v328
      %349 = vmatprep.subr.bf16.mxu0 0
      %350 = vmatpush1.bf16.msra.mxu0 %v327
      %351 = vmatprep.subr.bf16.mxu0 0
      %352 = vmatpush2.bf16.msra.mxu0 0
      %353 = vmatprep.subr.bf16.mxu0 0
      %354 = vmatpush2.bf16.msra.mxu0 0
      %355 = vmatprep.subr.bf16.mxu0 0
      %356 = vmatpush2.bf16.msra.mxu0 0
      %357 = vmatprep.subr.bf16.mxu0 0
      %358 = vmatpush2.bf16.msra.mxu0 0
      %359 = vmatprep.subr.bf16.mxu0 0
      %360 = vmatpush2.bf16.msra.mxu0 0
      %361 = vmatprep.subr.bf16.mxu0 0
      %362 = vmatpush2.bf16.msra.mxu0 0
      %363 = vmatprep.subr.bf16.mxu0 0
      %364 = vmatpush2.bf16.msra.mxu0 0
      %365 = vmatprep.subr.bf16.mxu0 0
      %366 = vmatpush2.bf16.msra.mxu0 0
      %367 = vmatprep.mubr.bf16.mxu0 0
      %368 = vmatmul.mubr.bf16.gmra.mxu0 %v333
      %v369 = vpop.f32.mrf.mxu0
      %v370 = vadd.f32 %v317, %v369
      %v371 = vpop.f32.mrf.mxu0
      %v372 = vpop.f32.mrf.mxu0
      %v373 = vpop.f32.mrf.mxu0
      %374 = vdwg.mxu0
      %v375 = vmax.f32 %v370, 0.0
      %v376 = vpack.c.bf16 %v375, %v375
      %v377 = vld [vmem:[%s4] sm:$0xf]
      %v378 = vld [vmem:[%s4 + $0x4] sm:$0xf]
      %v379 = vld [vmem:[%s4 + $0x8] sm:$0xf]
      %v380 = vld [vmem:[%s4 + $0xc] sm:$0xf]
      %v381 = vld [vmem:[%s5] sm:$0x1]
      %v383 = vlaneseq
      %v384 = vshrl.u32 %v383, 7
      %v385 = vsub.s32 0, %v384
      %v386 = vrot.slane %v381, %v385
      %v392 = vunpack.c.l.b16 %v377
      %v393 = vunpack.c.l.b16 %v378
      %v394 = vunpack.c.l.b16 %v379
      %v395 = vunpack.c.l.b16 %v380
      %v396 = vpack.c.b16 %v393, %v392
      %v397 = vpack.c.b16 %v395, %v394
      %v401 = vsel %vm331, %v376, 0
      %403 = vmatprep.subr.bf16.mxu0 0
      %404 = vmatpush1.bf16.msra.mxu0 0
      %405 = vmatprep.subr.bf16.mxu0 0
      %406 = vmatpush1.bf16.msra.mxu0 0
      %407 = vmatprep.subr.bf16.mxu0 0
      %408 = vmatpush1.bf16.msra.mxu0 0
      %409 = vmatprep.subr.bf16.mxu0 0
      %410 = vmatpush1.bf16.msra.mxu0 0
      %411 = vmatprep.subr.bf16.mxu0 0
      %412 = vmatpush1.bf16.msra.mxu0 0
      %413 = vmatprep.subr.bf16.mxu0 0
      %414 = vmatpush1.bf16.msra.mxu0 0
      %415 = vmatprep.subr.bf16.mxu0 0
      %416 = vmatpush1.bf16.msra.mxu0 %v397
      %417 = vmatprep.subr.bf16.mxu0 0
      %418 = vmatpush1.bf16.msra.mxu0 %v396
      %419 = vmatprep.subr.bf16.mxu0 0
      %420 = vmatpush2.bf16.msra.mxu0 0
      %421 = vmatprep.subr.bf16.mxu0 0
      %422 = vmatpush2.bf16.msra.mxu0 0
      %423 = vmatprep.subr.bf16.mxu0 0
      %424 = vmatpush2.bf16.msra.mxu0 0
      %425 = vmatprep.subr.bf16.mxu0 0
      %426 = vmatpush2.bf16.msra.mxu0 0
      %427 = vmatprep.subr.bf16.mxu0 0
      %428 = vmatpush2.bf16.msra.mxu0 0
      %429 = vmatprep.subr.bf16.mxu0 0
      %430 = vmatpush2.bf16.msra.mxu0 0
      %431 = vmatprep.subr.bf16.mxu0 0
      %432 = vmatpush2.bf16.msra.mxu0 0
      %433 = vmatprep.subr.bf16.mxu0 0
      %434 = vmatpush2.bf16.msra.mxu0 0
      %435 = vmatprep.mubr.bf16.mxu0 0
      %436 = vmatmul.mubr.bf16.gmra.mxu0 %v401
      %v437 = vpop.f32.mrf.mxu0
      %v438 = vadd.f32 %v386, %v437
      %v439 = vpop.f32.mrf.mxu0
      %v440 = vpop.f32.mrf.mxu0
      %v441 = vpop.f32.mrf.mxu0
      %442 = vdwg.mxu0
      %v443 = vmax.f32 %v438, 0.0
      %v444 = vpack.c.bf16 %v443, %v443
      %v445 = vld [vmem:[%s6] sm:$0xf]
      %v446 = vld [vmem:[%s6 + $0x4] sm:$0xf]
      %v447 = vld [vmem:[%s7] sm:$0x1]
      %v449 = vlaneseq
      %v450 = vshrl.u32 %v449, 7
      %v451 = vsub.s32 0, %v450
      %v452 = vrot.slane %v447, %v451
      %v456 = vunpack.c.l.b16 %v445
      %v457 = vunpack.c.l.b16 %v446
      %v458 = vpack.c.b16 %v457, %v456
      %vm460 = vcmask 130048
      %v462 = vsel %vm460, %v444, 0
      %464 = vmatprep.subr.bf16.mxu0 0
      %465 = vmatpush1.bf16.msra.mxu0 0
      %466 = vmatprep.subr.bf16.mxu0 0
      %467 = vmatpush1.bf16.msra.mxu0 0
      %468 = vmatprep.subr.bf16.mxu0 0
      %469 = vmatpush1.bf16.msra.mxu0 0
      %470 = vmatprep.subr.bf16.mxu0 0
      %471 = vmatpush1.bf16.msra.mxu0 0
      %472 = vmatprep.subr.bf16.mxu0 0
      %473 = vmatpush1.bf16.msra.mxu0 0
      %474 = vmatprep.subr.bf16.mxu0 0
      %475 = vmatpush1.bf16.msra.mxu0 0
      %476 = vmatprep.subr.bf16.mxu0 0
      %477 = vmatpush1.bf16.msra.mxu0 0
      %478 = vmatprep.subr.bf16.mxu0 0
      %479 = vmatpush1.bf16.msra.mxu0 %v458
      %480 = vmatprep.subr.bf16.mxu0 0
      %481 = vmatpush2.bf16.msra.mxu0 0
      %482 = vmatprep.subr.bf16.mxu0 0
      %483 = vmatpush2.bf16.msra.mxu0 0
      %484 = vmatprep.subr.bf16.mxu0 0
      %485 = vmatpush2.bf16.msra.mxu0 0
      %486 = vmatprep.subr.bf16.mxu0 0
      %487 = vmatpush2.bf16.msra.mxu0 0
      %488 = vmatprep.subr.bf16.mxu0 0
      %489 = vmatpush2.bf16.msra.mxu0 0
      %490 = vmatprep.subr.bf16.mxu0 0
      %491 = vmatpush2.bf16.msra.mxu0 0
      %492 = vmatprep.subr.bf16.mxu0 0
      %493 = vmatpush2.bf16.msra.mxu0 0
      %494 = vmatprep.subr.bf16.mxu0 0
      %495 = vmatpush2.bf16.msra.mxu0 0
      %496 = vmatprep.mubr.bf16.mxu0 0
      %497 = vmatmul.mubr.bf16.gmra.mxu0 %v462
      %v498 = vpop.f32.mrf.mxu0
      %v499 = vadd.f32 %v452, %v498
      %v500 = vpop.f32.mrf.mxu0
      %v501 = vpop.f32.mrf.mxu0
      %v502 = vpop.f32.mrf.mxu0
      %503 = vdwg.mxu0
      %vm504 = vcmask 64512
      %505 = vst.msk [vmem:[%s237] sm:$0xff] %vm504, %v499
      %p506 = scmp.lt.s32.totalorder %s25, 1
      %s507 = scalar_select %p506, %s25, 1
      %s508 = smul.addr %s507, 8
      %s509 = scalar_lea.vmem %s8, %s508
      // Predicated region
      $region89: #{mlp_forward.1} parent=43 // pred_check
        %p510 = pneg %p169
      $region90: #{mlp_forward.1} parent=43 // pred_check_branch
        %512 = sbr.rel (%p510) target = $region92
      $region91: #{mlp_forward.1} parent=43 // pred_region
        _
      $region92: #{mlp_forward.1} parent=43 // pred_fallthru
        _
    $region44: #{mlp_forward.1} parent=5 // pred_fallthru
      _
    %p513 = scmp.le.s32.totalorder 2, %s20
    // Predicated region
    $region93: #{mlp_forward.1} parent=5 // pred_check
      %p514 = pneg %p513
    $region94: #{mlp_forward.1} parent=5 // pred_check_branch
      %516 = sbr.rel (%p514) target = $region96
    $region95: #{mlp_forward.1} parent=5 // pred_region
      %s517 = ssub.s32 %s20, 2
      // Predicated region
      $region97: #{mlp_forward.1} parent=95 // pred_check
        %p518 = pneg %p175
      $region98: #{mlp_forward.1} parent=95 // pred_check_branch
        %520 = sbr.rel (%p518) target = $region100
      $region99: #{mlp_forward.1} parent=95 // pred_region
        %p521 = scmp.lt.s32.totalorder %s26, 1
        %s522 = scalar_select %p521, %s26, 1
        %s523 = smul.addr %s522, 8
        %s524 = scalar_lea.vmem %s8, %s523
      $region100: #{mlp_forward.1} parent=95 // pred_fallthru
        _
    $region96: #{mlp_forward.1} parent=5 // pred_fallthru
      _
  $region6: #{mlp_forward.1} parent=0 // loop_footer
    %s24 = sadd.s32 1, %s20
  $region7: #{mlp_forward.1} parent=0 // loop_footer_branch
    %19 = sbr.rel target = $region3
  $region8: #{mlp_forward.1} parent=0 // loop_exit
    _
  %525 = vsyncmov [#allocation3]
  %s526 = vpop.sfrf %525
  %p527 = scmp.eq.s32.totalorder %s526, 0
  %p528 = pneg %p527
  %530 = shalt.err (%p528)
  %s531 = scalar_lea.sflag [#allocation3], 1
  %532 = vsyncmov %s531
  %s533 = vpop.sfrf %532
  %p534 = scmp.eq.s32.totalorder %s533, 0
  %p535 = pneg %p534
  %537 = shalt.err (%p535)
  %s538 = scalar_lea.sflag [#allocation3], 2
  %539 = vsyncmov %s538
  %s540 = vpop.sfrf %539
  %p541 = scmp.eq.s32.totalorder %s540, 0
  %p542 = pneg %p541
  %544 = shalt.err (%p542)
  %s545 = scalar_lea.sflag [#allocation3], 3
  %546 = vsyncmov %s545
  %s547 = vpop.sfrf %546
  %p548 = scmp.eq.s32.totalorder %s547, 0
  %p549 = pneg %p548
  %551 = shalt.err (%p549)
  %s552 = scalar_lea.sflag [#allocation3], 4
  %553 = vsyncmov %s552
  %s554 = vpop.sfrf %553
  %p555 = scmp.eq.s32.totalorder %s554, 0
  %p556 = pneg %p555
  %558 = shalt.err (%p556)
  %s559 = scalar_lea.sflag [#allocation3], 5
  %560 = vsyncmov %s559
  %s561 = vpop.sfrf %560
  %p562 = scmp.eq.s32.totalorder %s561, 0
  %p563 = pneg %p562
  %565 = shalt.err (%p563)
  %s566 = scalar_lea.sflag [#allocation3], 6
  %567 = vsyncmov %s566
  %s568 = vpop.sfrf %567
  %p569 = scmp.eq.s32.totalorder %s568, 0
  %p570 = pneg %p569
  %572 = shalt.err (%p570)
  %s573 = scalar_lea.sflag [#allocation3], 7
  %574 = vsyncmov %s573
  %s575 = vpop.sfrf %574
  %p576 = scmp.eq.s32.totalorder %s575, 0
  %p577 = pneg %p576
  %579 = shalt.err (%p577)

</llo_original>
